<compile_context>
chip_gen: v6e
topology: v6e:2x2x1
jax: 0.10.0
libtpu: 0.0.40
codegen_flags: <defaults>
</compile_context>

<pallas_src>
import math
import functools

import jax
import jax.numpy as jnp
import numpy as np
from jax.experimental import pallas as pl
from jax.experimental.pallas import tpu as pltpu

SQRT_HALF = math.sqrt(0.5)


# ----------------------------------------------------------------------------
# Pallas kernel.
# grid = (B, n_tiles + 1).  At step (b, l) the kernel:
#   * computes output tile j = l - 1 (needs the first `pad` rows of tile l as
#     its right halo), using the VMEM carry scratch that holds input rows
#     [j*TL - pad, (j+1)*TL) of the (implicitly zero-padded) sequence,
#   * updates the carry scratch for the next step.
# The extra grid step l = n_tiles flushes the last tile (right halo = zeros).
# ----------------------------------------------------------------------------
def residual_block_kernel(x_ref, wfg_ref, bfg_ref, wrs_ref, brs_ref,
                          out_ref, skip_ref, carry_ref, *, C, dilation):
    d = dilation
    pad = d                                   # dilation * (3 - 1) // 2
    TL = x_ref.shape[1]
    l = pl.program_id(1)
    n_tiles = pl.num_programs(1) - 1

    cur = x_ref[0]                            # (TL, C), compute dtype

    @pl.when(l > 0)
    def _compute():
        carry = carry_ref[...]                                   # (TL + pad, C)
        head_rows = cur[:pad, :]                                 # first pad rows of tile l
        head = jnp.where(l < n_tiles, head_rows, jnp.zeros_like(head_rows))
        w = jnp.concatenate([carry, head], axis=0)               # (TL + 2*pad, C)

        # Dilated conv (kernel_size=3): fold the 3 taps into the K dimension
        # -> one wide MXU matmul with K = 3*C, N = 2*C (tanh half || sigmoid half).
        x3 = jnp.concatenate([w[k * d:k * d + TL, :] for k in range(3)],
                             axis=-1)                            # (TL, 3*C)
        h = jnp.dot(x3, wfg_ref[...],
                    preferred_element_type=jnp.float32) + bfg_ref[...]
        gate = jnp.tanh(h[:, :C]) * jax.nn.sigmoid(h[:, C:])     # (TL, C), f32

        # Fused 1x1 res (+) skip convs: one matmul with N = C + S.
        rs = jnp.dot(gate.astype(wrs_ref.dtype), wrs_ref[...],
                     preferred_element_type=jnp.float32) + brs_ref[...]

        x_orig = w[d:d + TL, :].astype(jnp.float32)              # original input tile j
        out_ref[0] = ((x_orig + rs[:, :C]) * SQRT_HALF).astype(out_ref.dtype)
        skip_ref[0] = rs[:, C:].astype(skip_ref.dtype)

    @pl.when(l < n_tiles)
    def _update_carry():
        # new carry = rows [l*TL - pad, (l+1)*TL)
        tail_rows = carry_ref[TL:, :]                            # rows [l*TL - pad, l*TL)
        tail = jnp.where(l > 0, tail_rows, jnp.zeros_like(tail_rows))
        carry_ref[:pad, :] = tail
        carry_ref[pad:, :] = cur


# ----------------------------------------------------------------------------
# Wrappers.
# ----------------------------------------------------------------------------
def _fuse_params(w_d, b_d, w_r, b_r, w_s, b_s, compute_dtype):
    """Fold torch-layout (OIK) weight-normed conv weights into fused MXU mats."""
    two_c, C, K = w_d.shape                          # (2C, C, 3)
    S = w_s.shape[0]
    # Gated dilated conv: rows ordered (tap k, in-channel); cols [0:C]=tanh half,
    # cols [C:2C]=sigmoid half.
    wfg = jnp.transpose(w_d, (2, 1, 0)).reshape(K * C, two_c).astype(compute_dtype)
    bfg = b_d.reshape(1, two_c).astype(jnp.float32)
    # Fused 1x1 res||skip conv: cols [0:C]=res, cols [C:C+S]=skip.
    wrs = jnp.concatenate([w_r[:, :, 0].T, w_s[:, :, 0].T], axis=1).astype(compute_dtype)
    brs = jnp.concatenate([b_r, b_s]).reshape(1, C + S).astype(jnp.float32)
    return wfg, bfg, wrs, brs


def _pick_tile_len(L, pad, target_rows=1024):
    """Largest multiple-of-8 divisor of L that is <= target_rows (and >= pad).

    target_rows=1024 keeps double-buffered activation tiles to a few MiB even at
    C=512, comfortably inside v7x's 64 MiB VMEM; re-tune per generation.
    """
    if L <= target_rows:
        return L
    t = (min(target_rows, L) // 8) * 8
    while t >= 8:
        if L % t == 0 and t >= pad:
            return t
        t -= 8
    return L


def residual_block_pallas_nlc(x_nlc, w_d, b_d, w_r, b_r, w_s, b_s, dilation, *,
                              compute_dtype=jnp.bfloat16, tile_len=None):
    """NLC-native forward.  x_nlc: (B, L, C).  Returns (out, skip) in NLC."""
    B, L, C = x_nlc.shape
    S = w_s.shape[0]
    assert w_d.shape == (2 * C, C, 3) and w_r.shape == (C, C, 1) and w_s.shape == (S, C, 1)
    pad = dilation * (3 - 1) // 2                    # == dilation
    TL = tile_len if tile_len is not None else _pick_tile_len(L, pad)
    if L % TL != 0 or (TL != L and TL % 8 != 0):
        raise ValueError(f"tile_len={TL} must divide L={L} and be a multiple of 8")
    if TL < pad:
        raise ValueError(f"tile_len={TL} must be >= pad={pad}")
    n_tiles = L // TL

    wfg, bfg, wrs, brs = _fuse_params(w_d, b_d, w_r, b_r, w_s, b_s, compute_dtype)
    x_in = x_nlc.astype(compute_dtype)

    kernel = functools.partial(residual_block_kernel, C=C, dilation=dilation)
    out, skip = pl.pallas_call(
        kernel,
        out_shape=(jax.ShapeDtypeStruct((B, L, C), x_nlc.dtype),
                   jax.ShapeDtypeStruct((B, L, S), x_nlc.dtype)),
        grid=(B, n_tiles + 1),                       # extra step flushes last tile
        in_specs=[
            # per-tile activation block; clamped at the flush step (re-uses last tile)
            pl.BlockSpec((1, TL, C), lambda b, l: (b, jnp.minimum(l, n_tiles - 1), 0)),
            # fused weights / biases: constant index map -> DMA'd once, stay resident
            pl.BlockSpec((3 * C, 2 * C), lambda b, l: (0, 0)),
            pl.BlockSpec((1, 2 * C), lambda b, l: (0, 0)),
            pl.BlockSpec((C, C + S), lambda b, l: (0, 0)),
            pl.BlockSpec((1, C + S), lambda b, l: (0, 0)),
        ],
        out_specs=(
            # output tile j = l - 1 (revisited at l=0/1, written back on index change)
            pl.BlockSpec((1, TL, C), lambda b, l: (b, jnp.maximum(l - 1, 0), 0)),
            pl.BlockSpec((1, TL, S), lambda b, l: (b, jnp.maximum(l - 1, 0), 0)),
        ),
        scratch_shapes=[pltpu.VMEM((TL + pad, C), compute_dtype)],   # halo carry
        compiler_params=pltpu.CompilerParams(
            dimension_semantics=("parallel", "arbitrary"),
            vmem_limit_bytes=48 * 1024 * 1024,       # headroom under v7x's 64 MiB
        ),
    )(x_in, wfg, bfg, wrs, brs)
    return out, skip


def residual_block_pallas(x, w_d, b_d, w_r, b_r, w_s, b_s, dilation, *,
                          compute_dtype=jnp.bfloat16, tile_len=None):
    """PyTorch-layout wrapper: x is (B, C, L) NCL.

    A full WaveNet stack should stay in NLC and call residual_block_pallas_nlc
    directly so the layout transposes happen only once at model entry/exit.
    """
    x_nlc = jnp.transpose(x, (0, 2, 1))
    out, skip = residual_block_pallas_nlc(
        x_nlc, w_d, b_d, w_r, b_r, w_s, b_s, dilation,
        compute_dtype=compute_dtype, tile_len=tile_len)
    return jnp.transpose(out, (0, 2, 1)), jnp.transpose(skip, (0, 2, 1))


# ----------------------------------------------------------------------------
# Parameter construction (deterministic, synthetic).  weight_norm semantics:
# w = g * v / ||v||  with the norm over all dims except dim 0 (torch default).
# ----------------------------------------------------------------------------
def apply_weight_norm(v, g):
    norm = jnp.sqrt(jnp.sum(v * v, axis=tuple(range(1, v.ndim)), keepdims=True))
    return g.reshape((-1,) + (1,) * (v.ndim - 1)) * v / norm


def make_params(key, res_channels, skip_channels):
    C, S = res_channels, skip_channels
    ks = jax.random.split(key, 9)
    v_d = jax.random.normal(ks[0], (2 * C, C, 3), jnp.float32) * math.sqrt(2.0 / (C * 3))
    g_d = 1.0 + 0.1 * jax.random.normal(ks[1], (2 * C,), jnp.float32)
    b_d = 0.1 * jax.random.normal(ks[2], (2 * C,), jnp.float32)
    v_r = jax.random.normal(ks[3], (C, C, 1), jnp.float32) * math.sqrt(2.0 / C)
    g_r = 1.0 + 0.1 * jax.random.normal(ks[4], (C,), jnp.float32)
    b_r = 0.1 * jax.random.normal(ks[5], (C,), jnp.float32)
    v_s = jax.random.normal(ks[6], (S, C, 1), jnp.float32) * math.sqrt(2.0 / C)
    g_s = 1.0 + 0.1 * jax.random.normal(ks[7], (S,), jnp.float32)
    b_s = 0.1 * jax.random.normal(ks[8], (S,), jnp.float32)

    w_d = apply_weight_norm(v_d, g_d)                # (2C, C, 3)  torch OIK layout
    w_r = apply_weight_norm(v_r, g_r)                # (C, C, 1)
    w_s = apply_weight_norm(v_s, g_s)                # (S, C, 1)
    return (w_d, b_d, w_r, b_r, w_s, b_s)


# Pure-JAX reference (mirrors the PyTorch forward exactly).
def residual_block_ref(x, params, dilation):
    w_d, b_d, w_r, b_r, w_s, b_s = params
    C = x.shape[1]
    pad = dilation * (3 - 1) // 2
    dn = ('NCH', 'OIH', 'NCH')
    h = jax.lax.conv_general_dilated(
        x, w_d, window_strides=(1,), padding=[(pad, pad)],
        rhs_dilation=(dilation,), dimension_numbers=dn) + b_d[None, :, None]
    out = jnp.tanh(h[:, :C]) * jax.nn.sigmoid(h[:, C:])
    res = jax.lax.conv_general_dilated(
        out, w_r, (1,), [(0, 0)], dimension_numbers=dn) + b_r[None, :, None]
    skip = jax.lax.conv_general_dilated(
        out, w_s, (1,), [(0, 0)], dimension_numbers=dn) + b_s[None, :, None]
    return (x + res) * math.sqrt(0.5), skip


if __name__ == "__main__":
    key = jax.random.PRNGKey(0)

    # --- Case 1: f32 compute, 4 L-tiles (exercises the halo-carry path). -----
    B, C, S, L, dilation = 2, 8, 16, 64, 2
    k1, k2, key = jax.random.split(key, 3)
    x = jax.random.normal(k1, (B, C, L), jnp.float32)
    params = make_params(k2, C, S)

    fn32 = jax.jit(functools.partial(residual_block_pallas, dilation=dilation,
                                     compute_dtype=jnp.float32, tile_len=16))
    out_pl, skip_pl = fn32(x, *params)
    jax.block_until_ready((out_pl, skip_pl))
    out_rf, skip_rf = residual_block_ref(x, params, dilation)
    np.testing.assert_allclose(np.asarray(out_pl), np.asarray(out_rf), rtol=1e-4, atol=1e-4)
    np.testing.assert_allclose(np.asarray(skip_pl), np.asarray(skip_rf), rtol=1e-4, atol=1e-4)

    # --- Case 2: bf16 MXU inputs (f32 accumulation), larger dilation. --------
    B, C, S, L, dilation = 2, 16, 16, 128, 4
    k1, k2, key = jax.random.split(key, 3)
    x = jax.random.normal(k1, (B, C, L), jnp.float32)
    params = make_params(k2, C, S)

    fn16 = jax.jit(functools.partial(residual_block_pallas, dilation=dilation,
                                     compute_dtype=jnp.bfloat16, tile_len=32))
    out_pl, skip_pl = fn16(x, *params)
    jax.block_until_ready((out_pl, skip_pl))
    out_rf, skip_rf = residual_block_ref(x, params, dilation)
    np.testing.assert_allclose(np.asarray(out_pl), np.asarray(out_rf), rtol=5e-2, atol=5e-2)
    np.testing.assert_allclose(np.asarray(skip_pl), np.asarray(skip_rf), rtol=5e-2, atol=5e-2)

    print("KERNEL_OK")
</pallas_src>

<mosaic_0001>
module attributes {stable_mosaic.version = 11 : i64} {
  func.func @residual_block_kernel(%arg0: i32, %arg1: i32, %arg2: memref<1x16x8xf32, #tpu.memory_space<vmem>>, %arg3: memref<24x16xf32, #tpu.memory_space<vmem>>, %arg4: memref<1x16xf32, #tpu.memory_space<vmem>>, %arg5: memref<8x24xf32, #tpu.memory_space<vmem>>, %arg6: memref<1x24xf32, #tpu.memory_space<vmem>>, %arg7: memref<1x16x8xf32, #tpu.memory_space<vmem>>, %arg8: memref<1x16x16xf32, #tpu.memory_space<vmem>>, %arg9: memref<18x8xf32, #tpu.memory_space<vmem>>) attributes {dimension_semantics = [#tpu.dimension_semantics<parallel>, #tpu.dimension_semantics<arbitrary>], iteration_bounds = array<i64: 2, 5>, scalar_prefetch = 0 : i64, scratch_operands = 1 : i64, tpu.core_type = #tpu.core_type<tc>, window_params = [{transform_indices = @transform_0, window_bounds = array<i64: 1, 16, 8>}, {pipeline_mode = #tpu.pipeline_mode<synchronous>, transform_indices = @transform_1, window_bounds = array<i64: 24, 16>}, {pipeline_mode = #tpu.pipeline_mode<synchronous>, transform_indices = @transform_2, window_bounds = array<i64: 1, 16>}, {pipeline_mode = #tpu.pipeline_mode<synchronous>, transform_indices = @transform_3, window_bounds = array<i64: 8, 24>}, {pipeline_mode = #tpu.pipeline_mode<synchronous>, transform_indices = @transform_4, window_bounds = array<i64: 1, 24>}, {transform_indices = @transform_5, window_bounds = array<i64: 1, 16, 8>}, {transform_indices = @transform_6, window_bounds = array<i64: 1, 16, 16>}]} {
    %c0 = arith.constant 0 : index
    %c0_0 = arith.constant 0 : index
    %c0_1 = arith.constant 0 : index
    %0 = vector.load %arg2[%c0, %c0_0, %c0_1] : memref<1x16x8xf32, #tpu.memory_space<vmem>>, vector<1x16x8xf32>
    %1 = vector.shape_cast %0 : vector<1x16x8xf32> to vector<16x8xf32>
    %c0_i32 = arith.constant 0 : i32
    %2 = arith.cmpi sgt, %arg1, %c0_i32 : i32
    %3 = arith.extui %2 : i1 to i32
    %c0_i32_2 = arith.constant 0 : i32
    %4 = arith.cmpi ne, %3, %c0_i32_2 : i32
    scf.if %4 {
      %c0_4 = arith.constant 0 : index
      %c0_5 = arith.constant 0 : index
      %8 = vector.load %arg9[%c0_4, %c0_5] : memref<18x8xf32, #tpu.memory_space<vmem>>, vector<18x8xf32>
      %9 = vector.extract_strided_slice %1 {offsets = [0, 0], sizes = [2, 8], strides = [1, 1]} : vector<16x8xf32> to vector<2x8xf32>
      %c4_i32_6 = arith.constant 4 : i32
      %10 = arith.cmpi slt, %arg1, %c4_i32_6 : i32
      %cst = arith.constant 0.000000e+00 : f32
      %11 = vector.broadcast %cst : f32 to vector<2x8xf32>
      %12 = arith.select %10, %9, %11 : vector<2x8xf32>
      %13 = tpu.concatenate %8, %12 in 0 : vector<18x8xf32>, vector<2x8xf32> -> vector<20x8xf32>
      %14 = vector.extract_strided_slice %13 {offsets = [0, 0], sizes = [16, 8], strides = [1, 1]} : vector<20x8xf32> to vector<16x8xf32>
      %15 = vector.extract_strided_slice %13 {offsets = [2, 0], sizes = [16, 8], strides = [1, 1]} : vector<20x8xf32> to vector<16x8xf32>
      %16 = vector.extract_strided_slice %13 {offsets = [4, 0], sizes = [16, 8], strides = [1, 1]} : vector<20x8xf32> to vector<16x8xf32>
      %17 = tpu.concatenate %14, %15, %16 in 1 : vector<16x8xf32>, vector<16x8xf32>, vector<16x8xf32> -> vector<16x24xf32>
      %c0_7 = arith.constant 0 : index
      %c0_8 = arith.constant 0 : index
      %18 = vector.load %arg3[%c0_7, %c0_8] : memref<24x16xf32, #tpu.memory_space<vmem>>, vector<24x16xf32>
      %cst_9 = arith.constant dense<0.000000e+00> : vector<16x16xf32>
      %19 = tpu.matmul %17, %18, %cst_9 {dimension_numbers = #tpu.dot_dimension_numbers<[1], [0], [0], [1], [0, 0, 1, 1], [], []>} : vector<16x24xf32>, vector<24x16xf32>, vector<16x16xf32> -> vector<16x16xf32>
      %c0_10 = arith.constant 0 : index
      %c0_11 = arith.constant 0 : index
      %20 = vector.load %arg4[%c0_10, %c0_11] : memref<1x16xf32, #tpu.memory_space<vmem>>, vector<1x16xf32>
      %21 = vector.broadcast %20 : vector<1x16xf32> to vector<16x16xf32>
      %22 = arith.addf %19, %21 : vector<16x16xf32>
      %23 = vector.extract_strided_slice %22 {offsets = [0, 0], sizes = [16, 8], strides = [1, 1]} : vector<16x16xf32> to vector<16x8xf32>
      %24 = math.tanh %23 : vector<16x8xf32>
      %25 = vector.extract_strided_slice %22 {offsets = [0, 8], sizes = [16, 8], strides = [1, 1]} : vector<16x16xf32> to vector<16x8xf32>
      %26 = arith.negf %25 : vector<16x8xf32>
      %27 = math.exp %26 : vector<16x8xf32>
      %cst_12 = arith.constant 1.000000e+00 : f32
      %28 = vector.broadcast %cst_12 : f32 to vector<16x8xf32>
      %29 = arith.addf %28, %27 : vector<16x8xf32>
      %30 = arith.divf %28, %29 : vector<16x8xf32>
      %31 = arith.mulf %24, %30 : vector<16x8xf32>
      %c0_13 = arith.constant 0 : index
      %c0_14 = arith.constant 0 : index
      %32 = vector.load %arg5[%c0_13, %c0_14] : memref<8x24xf32, #tpu.memory_space<vmem>>, vector<8x24xf32>
      %cst_15 = arith.constant dense<0.000000e+00> : vector<16x24xf32>
      %33 = tpu.matmul %31, %32, %cst_15 {dimension_numbers = #tpu.dot_dimension_numbers<[1], [0], [0], [1], [0, 0, 1, 1], [], []>} : vector<16x8xf32>, vector<8x24xf32>, vector<16x24xf32> -> vector<16x24xf32>
      %c0_16 = arith.constant 0 : index
      %c0_17 = arith.constant 0 : index
      %34 = vector.load %arg6[%c0_16, %c0_17] : memref<1x24xf32, #tpu.memory_space<vmem>>, vector<1x24xf32>
      %35 = vector.broadcast %34 : vector<1x24xf32> to vector<16x24xf32>
      %36 = arith.addf %33, %35 : vector<16x24xf32>
      %37 = vector.extract_strided_slice %13 {offsets = [2, 0], sizes = [16, 8], strides = [1, 1]} : vector<20x8xf32> to vector<16x8xf32>
      %38 = vector.extract_strided_slice %36 {offsets = [0, 0], sizes = [16, 8], strides = [1, 1]} : vector<16x24xf32> to vector<16x8xf32>
      %39 = arith.addf %37, %38 : vector<16x8xf32>
      %cst_18 = arith.constant 0.707106769 : f32
      %40 = vector.broadcast %cst_18 : f32 to vector<16x8xf32>
      %41 = arith.mulf %39, %40 : vector<16x8xf32>
      %c0_19 = arith.constant 0 : index
      %c0_20 = arith.constant 0 : index
      %c0_21 = arith.constant 0 : index
      %42 = vector.load %arg7[%c0_19, %c0_20, %c0_21] : memref<1x16x8xf32, #tpu.memory_space<vmem>>, vector<1x16x8xf32>
      %43 = vector.shape_cast %42 : vector<1x16x8xf32> to vector<16x8xf32>
      %44 = vector.shape_cast %41 : vector<16x8xf32> to vector<1x16x8xf32>
      tpu.vector_store %arg7[%c0_19, %c0_20, %c0_21], %44 {strides = array<i32>} : memref<1x16x8xf32, #tpu.memory_space<vmem>>, vector<1x16x8xf32>,
      %45 = vector.extract_strided_slice %36 {offsets = [0, 8], sizes = [16, 16], strides = [1, 1]} : vector<16x24xf32> to vector<16x16xf32>
      %c0_22 = arith.constant 0 : index
      %c0_23 = arith.constant 0 : index
      %c0_24 = arith.constant 0 : index
      %46 = vector.load %arg8[%c0_22, %c0_23, %c0_24] : memref<1x16x16xf32, #tpu.memory_space<vmem>>, vector<1x16x16xf32>
      %47 = vector.shape_cast %46 : vector<1x16x16xf32> to vector<16x16xf32>
      %48 = vector.shape_cast %45 : vector<16x16xf32> to vector<1x16x16xf32>
      tpu.vector_store %arg8[%c0_22, %c0_23, %c0_24], %48 {strides = array<i32>} : memref<1x16x16xf32, #tpu.memory_space<vmem>>, vector<1x16x16xf32>,
    } else {
    }
    %c4_i32 = arith.constant 4 : i32
    %5 = arith.cmpi slt, %arg1, %c4_i32 : i32
    %6 = arith.extui %5 : i1 to i32
    %c0_i32_3 = arith.constant 0 : i32
    %7 = arith.cmpi ne, %6, %c0_i32_3 : i32
    scf.if %7 {
      %c16 = arith.constant 16 : index
      %c0_4 = arith.constant 0 : index
      %8 = vector.load %arg9[%c16, %c0_4] : memref<18x8xf32, #tpu.memory_space<vmem>>, vector<2x8xf32>
      %c0_i32_5 = arith.constant 0 : i32
      %9 = arith.cmpi sgt, %arg1, %c0_i32_5 : i32
      %cst = arith.constant 0.000000e+00 : f32
      %10 = vector.broadcast %cst : f32 to vector<2x8xf32>
      %11 = arith.select %9, %8, %10 : vector<2x8xf32>
      %c0_6 = arith.constant 0 : index
      %c0_7 = arith.constant 0 : index
      %12 = vector.load %arg9[%c0_6, %c0_7] : memref<18x8xf32, #tpu.memory_space<vmem>>, vector<2x8xf32>
      tpu.vector_store %arg9[%c0_6, %c0_7], %11 {strides = array<i32>} : memref<18x8xf32, #tpu.memory_space<vmem>>, vector<2x8xf32>,
      %c2 = arith.constant 2 : index
      %c0_8 = arith.constant 0 : index
      %13 = vector.load %arg9[%c2, %c0_8] : memref<18x8xf32, #tpu.memory_space<vmem>>, vector<16x8xf32>
      tpu.vector_store %arg9[%c2, %c0_8], %1 {strides = array<i32>} : memref<18x8xf32, #tpu.memory_space<vmem>>, vector<16x8xf32>,
    } else {
    }
    return
  }
  func.func @transform_0(%arg0: i32, %arg1: i32) -> (i32, i32, i32) {
    %c3_i32 = arith.constant 3 : i32
    %0 = arith.minsi %arg1, %c3_i32 : i32
    %c0_i32 = arith.constant 0 : i32
    %c0_i32_0 = arith.constant 0 : i32
    return %arg0, %0, %c0_i32 : i32, i32, i32
  }
  func.func @transform_1(%arg0: i32, %arg1: i32) -> (i32, i32) {
    %c0_i32 = arith.constant 0 : i32
    %c0_i32_0 = arith.constant 0 : i32
    %c0_i32_1 = arith.constant 0 : i32
    return %c0_i32, %c0_i32_0 : i32, i32
  }
  func.func @transform_2(%arg0: i32, %arg1: i32) -> (i32, i32) {
    %c0_i32 = arith.constant 0 : i32
    %c0_i32_0 = arith.constant 0 : i32
    %c0_i32_1 = arith.constant 0 : i32
    return %c0_i32, %c0_i32_0 : i32, i32
  }
  func.func @transform_3(%arg0: i32, %arg1: i32) -> (i32, i32) {
    %c0_i32 = arith.constant 0 : i32
    %c0_i32_0 = arith.constant 0 : i32
    %c0_i32_1 = arith.constant 0 : i32
    return %c0_i32, %c0_i32_0 : i32, i32
  }
  func.func @transform_4(%arg0: i32, %arg1: i32) -> (i32, i32) {
    %c0_i32 = arith.constant 0 : i32
    %c0_i32_0 = arith.constant 0 : i32
    %c0_i32_1 = arith.constant 0 : i32
    return %c0_i32, %c0_i32_0 : i32, i32
  }
  func.func @transform_5(%arg0: i32, %arg1: i32) -> (i32, i32, i32) {
    %c1_i32 = arith.constant 1 : i32
    %0 = arith.subi %arg1, %c1_i32 : i32
    %c0_i32 = arith.constant 0 : i32
    %1 = arith.maxsi %0, %c0_i32 : i32
    %c0_i32_0 = arith.constant 0 : i32
    %c0_i32_1 = arith.constant 0 : i32
    return %arg0, %1, %c0_i32_0 : i32, i32, i32
  }
  func.func @transform_6(%arg0: i32, %arg1: i32) -> (i32, i32, i32) {
    %c1_i32 = arith.constant 1 : i32
    %0 = arith.subi %arg1, %c1_i32 : i32
    %c0_i32 = arith.constant 0 : i32
    %1 = arith.maxsi %0, %c0_i32 : i32
    %c0_i32_0 = arith.constant 0 : i32
    %c0_i32_1 = arith.constant 0 : i32
    return %arg0, %1, %c0_i32_0 : i32, i32, i32
  }
}

</mosaic_0001>

<llo_original>
// kernel: residual_block_pallas.1
$region0: #{residual_block_pallas.1}
  #allocation0 [shape = 'u32[]', space=smem, size = 0x4, offset = 0x4, fixed_abs, tag = 'smem constant byte address 0x4 - core index']
  #allocation1 [shape = 'u32[144,128]{1,0:T(1,128)}', space=vmem, size = 0x12000, scoped, tag = 'internal scratch']
  #allocation2 [shape = 'f32[18,8]{1,0:T(8,128)}', space=vmem, size = 0x3000, scoped, tag = 'scratch operand']
  %s0 = inlined_call_operand.vmem [shape: f32[2,64,8], index: 0, kind: input, shape index: {}]
  %s1 = inlined_call_operand.vmem [shape: f32[24,16], index: 1, kind: input, shape index: {}]
  %s2 = inlined_call_operand.vmem [shape: f32[1,16], index: 2, kind: input, shape index: {}]
  %s3 = inlined_call_operand.vmem [shape: f32[8,24], index: 3, kind: input, shape index: {}]
  %s4 = inlined_call_operand.vmem [shape: f32[1,24], index: 4, kind: input, shape index: {}]
  %s5 = inlined_call_operand.vmem [shape: f32[2,64,8], index: 5, kind: output, shape index: {0}]
  %s6 = inlined_call_operand.vmem [shape: f32[2,64,16], index: 6, kind: output, shape index: {1}]
  %7 = xla_tuple %s5, %s6
  %s8 = sld [smem:[#allocation0]]
  $region69: #{residual_block_pallas.1} parent=0
    _
  %s10 = ssub.s32 1, %s8
  %s11 = scalar_select 0, %s10, %s8
  loop: start=0, step=1, limit=12
  $region2: #{residual_block_pallas.1} parent=0 // loop_pre_header
    _
  $region3: #{residual_block_pallas.1} parent=0 // loop_header
    %s13 = sphi 0, %s17
    %p14 = scmp.ge.s32.totalorder %s13, 12
    %s20 = sphi 0, %s32
    %s21 = sphi 0, %s28
    %s22 = sphi 0, %s20
    %s23 = sphi 0, %s21
    %s24 = sphi 0, %s22
    %s25 = sphi 0, %s23
    %s41 = sphi 0, %s43
    %s44 = sphi 0, %s41
    %s45 = sphi 0, %s44
    %s61 = sphi 0, %s45
    %s65 = sphi 0, %s65
    %s67 = sphi 0, %s65
    %s68 = sphi 0, %s67
    %s82 = sphi 0, %s68
    %s86 = sphi 0, %s86
    %s88 = sphi 0, %s86
    %s89 = sphi 0, %s88
    %s103 = sphi 0, %s89
    %s107 = sphi 0, %s107
    %s109 = sphi 0, %s107
    %s110 = sphi 0, %s109
    %s124 = sphi 0, %s110
    %s128 = sphi 0, %s128
    %s130 = sphi 0, %s128
    %s131 = sphi 0, %s130
    %s145 = sphi 0, %s131
    %s159 = sphi 0, %s161
    %s162 = sphi 0, %s159
    %s163 = sphi 0, %s162
    %s179 = sphi 0, %s163
    %s193 = sphi 0, %s195
    %s196 = sphi 0, %s193
    %s197 = sphi 0, %s196
    %s213 = sphi 0, %s197
  $region4: #{residual_block_pallas.1} parent=0 // loop_header_branch
    %16 = sbr.rel (%p14) target = $region8
  $region5: #{residual_block_pallas.1} parent=0 // loop_body
    %s18 = ssub.s32 %s13, 1
    %s19 = ssub.s32 %s13, 2
    %s26 = sadd.s32 1, %s21
    %p27 = scmp.ge.s32.totalorder %s26, 5
    %s28 = scalar_select %p27, 0, %s26
    %s29 = sadd.s32 1, %s20
    %s30 = scalar_select %p27, %s29, %s20
    %p31 = scmp.ge.s32.totalorder %s30, 2
    %s32 = scalar_select %p31, 0, %s30
    %p33 = scmp.lt.s32.totalorder %s21, 3
    %s34 = scalar_select %p33, %s21, 3
    %p35 = scmp.lt.s32.totalorder %s28, 3
    %s36 = scalar_select %p35, %s28, 3
    %s37 = ssub.s32 %s20, %s32
    %s38 = ssub.s32 %s34, %s36
    %s39 = sor.u32 %s37, %s38
    %p40 = scmp.eq.s32.totalorder %s39, 0
    %s42 = sadd.s32 %s41, 1
    %s43 = scalar_select %p40, %s41, %s42
    %p46 = pneg %p40
    %p47 = scmp.eq.s32.totalorder %s13, 9
    %p48 = por %p46, %p47
    %p49 = scmp.ne.s32.totalorder %s41, %s44
    %p50 = scmp.eq.s32.totalorder %s13, 0
    %p51 = por %p49, %p50
    %p52 = scmp.ne.s32.totalorder %s41, %s44
    %p53 = scmp.eq.s32.totalorder %s18, 9
    %p54 = por %p52, %p53
    %p55 = scmp.ne.s32.totalorder %s44, %s45
    %p56 = scmp.eq.s32.totalorder %s18, 0
    %p57 = por %p55, %p56
    %p58 = scmp.ne.s32.totalorder %s44, %s45
    %p59 = scmp.eq.s32.totalorder %s19, 9
    %p60 = por %p58, %p59
    %p62 = scmp.ne.s32.totalorder %s45, %s61
    %p63 = scmp.eq.s32.totalorder %s19, 0
    %p64 = por %p62, %p63
    %s66 = sadd.s32 %s65, 1
    %p69 = scmp.eq.s32.totalorder %s13, 9
    %p70 = scmp.ne.s32.totalorder %s65, %s67
    %p71 = scmp.eq.s32.totalorder %s13, 0
    %p72 = por %p70, %p71
    %p73 = scmp.ne.s32.totalorder %s65, %s67
    %p74 = scmp.eq.s32.totalorder %s18, 9
    %p75 = por %p73, %p74
    %p76 = scmp.ne.s32.totalorder %s67, %s68
    %p77 = scmp.eq.s32.totalorder %s18, 0
    %p78 = por %p76, %p77
    %p79 = scmp.ne.s32.totalorder %s67, %s68
    %p80 = scmp.eq.s32.totalorder %s19, 9
    %p81 = por %p79, %p80
    %p83 = scmp.ne.s32.totalorder %s68, %s82
    %p84 = scmp.eq.s32.totalorder %s19, 0
    %p85 = por %p83, %p84
    %s87 = sadd.s32 %s86, 1
    %p90 = scmp.eq.s32.totalorder %s13, 9
    %p91 = scmp.ne.s32.totalorder %s86, %s88
    %p92 = scmp.eq.s32.totalorder %s13, 0
    %p93 = por %p91, %p92
    %p94 = scmp.ne.s32.totalorder %s86, %s88
    %p95 = scmp.eq.s32.totalorder %s18, 9
    %p96 = por %p94, %p95
    %p97 = scmp.ne.s32.totalorder %s88, %s89
    %p98 = scmp.eq.s32.totalorder %s18, 0
    %p99 = por %p97, %p98
    %p100 = scmp.ne.s32.totalorder %s88, %s89
    %p101 = scmp.eq.s32.totalorder %s19, 9
    %p102 = por %p100, %p101
    %p104 = scmp.ne.s32.totalorder %s89, %s103
    %p105 = scmp.eq.s32.totalorder %s19, 0
    %p106 = por %p104, %p105
    %s108 = sadd.s32 %s107, 1
    %p111 = scmp.eq.s32.totalorder %s13, 9
    %p112 = scmp.ne.s32.totalorder %s107, %s109
    %p113 = scmp.eq.s32.totalorder %s13, 0
    %p114 = por %p112, %p113
    %p115 = scmp.ne.s32.totalorder %s107, %s109
    %p116 = scmp.eq.s32.totalorder %s18, 9
    %p117 = por %p115, %p116
    %p118 = scmp.ne.s32.totalorder %s109, %s110
    %p119 = scmp.eq.s32.totalorder %s18, 0
    %p120 = por %p118, %p119
    %p121 = scmp.ne.s32.totalorder %s109, %s110
    %p122 = scmp.eq.s32.totalorder %s19, 9
    %p123 = por %p121, %p122
    %p125 = scmp.ne.s32.totalorder %s110, %s124
    %p126 = scmp.eq.s32.totalorder %s19, 0
    %p127 = por %p125, %p126
    %s129 = sadd.s32 %s128, 1
    %p132 = scmp.eq.s32.totalorder %s13, 9
    %p133 = scmp.ne.s32.totalorder %s128, %s130
    %p134 = scmp.eq.s32.totalorder %s13, 0
    %p135 = por %p133, %p134
    %p136 = scmp.ne.s32.totalorder %s128, %s130
    %p137 = scmp.eq.s32.totalorder %s18, 9
    %p138 = por %p136, %p137
    %p139 = scmp.ne.s32.totalorder %s130, %s131
    %p140 = scmp.eq.s32.totalorder %s18, 0
    %p141 = por %p139, %p140
    %p142 = scmp.ne.s32.totalorder %s130, %s131
    %p143 = scmp.eq.s32.totalorder %s19, 9
    %p144 = por %p142, %p143
    %p146 = scmp.ne.s32.totalorder %s131, %s145
    %p147 = scmp.eq.s32.totalorder %s19, 0
    %p148 = por %p146, %p147
    %s149 = ssub.s32 %s21, 1
    %p150 = scmp.gt.s32.totalorder %s149, 0
    %s151 = scalar_select %p150, %s149, 0
    %s152 = ssub.s32 %s28, 1
    %p153 = scmp.gt.s32.totalorder %s152, 0
    %s154 = scalar_select %p153, %s152, 0
    %s155 = ssub.s32 %s20, %s32
    %s156 = ssub.s32 %s151, %s154
    %s157 = sor.u32 %s155, %s156
    %p158 = scmp.eq.s32.totalorder %s157, 0
    %s160 = sadd.s32 %s159, 1
    %s161 = scalar_select %p158, %s159, %s160
    %p164 = pneg %p158
    %p165 = scmp.eq.s32.totalorder %s13, 9
    %p166 = por %p164, %p165
    %p167 = scmp.ne.s32.totalorder %s159, %s162
    %p168 = scmp.eq.s32.totalorder %s13, 0
    %p169 = por %p167, %p168
    %p170 = scmp.ne.s32.totalorder %s159, %s162
    %p171 = scmp.eq.s32.totalorder %s18, 9
    %p172 = por %p170, %p171
    %p173 = scmp.ne.s32.totalorder %s162, %s163
    %p174 = scmp.eq.s32.totalorder %s18, 0
    %p175 = por %p173, %p174
    %p176 = scmp.ne.s32.totalorder %s162, %s163
    %p177 = scmp.eq.s32.totalorder %s19, 9
    %p178 = por %p176, %p177
    %p180 = scmp.ne.s32.totalorder %s163, %s179
    %p181 = scmp.eq.s32.totalorder %s19, 0
    %p182 = por %p180, %p181
    %s183 = ssub.s32 %s21, 1
    %p184 = scmp.gt.s32.totalorder %s183, 0
    %s185 = scalar_select %p184, %s183, 0
    %s186 = ssub.s32 %s28, 1
    %p187 = scmp.gt.s32.totalorder %s186, 0
    %s188 = scalar_select %p187, %s186, 0
    %s189 = ssub.s32 %s20, %s32
    %s190 = ssub.s32 %s185, %s188
    %s191 = sor.u32 %s189, %s190
    %p192 = scmp.eq.s32.totalorder %s191, 0
    %s194 = sadd.s32 %s193, 1
    %s195 = scalar_select %p192, %s193, %s194
    %p198 = pneg %p192
    %p199 = scmp.eq.s32.totalorder %s13, 9
    %p200 = por %p198, %p199
    %p201 = scmp.ne.s32.totalorder %s193, %s196
    %p202 = scmp.eq.s32.totalorder %s13, 0
    %p203 = por %p201, %p202
    %p204 = scmp.ne.s32.totalorder %s193, %s196
    %p205 = scmp.eq.s32.totalorder %s18, 9
    %p206 = por %p204, %p205
    %p207 = scmp.ne.s32.totalorder %s196, %s197
    %p208 = scmp.eq.s32.totalorder %s18, 0
    %p209 = por %p207, %p208
    %p210 = scmp.ne.s32.totalorder %s196, %s197
    %p211 = scmp.eq.s32.totalorder %s19, 9
    %p212 = por %p210, %p211
    %p214 = scmp.ne.s32.totalorder %s197, %s213
    %p215 = scmp.eq.s32.totalorder %s19, 0
    %p216 = por %p214, %p215
    %p217 = scmp.le.s32.totalorder 1, %s13
    %p218 = scmp.lt.s32.totalorder %s13, 11
    %p219 = pnand %p217, %p218
    %p220 = pneg %p219
    // Predicated region
    $region9: #{residual_block_pallas.1} parent=5 // pred_check
      _
    $region10: #{residual_block_pallas.1} parent=5 // pred_check_branch
      %222 = sbr.rel (%p219) target = $region12
    $region11: #{residual_block_pallas.1} parent=5 // pred_region
      %s223 = ssub.s32 %s13, 1
      // Predicated region
      $region13: #{residual_block_pallas.1} parent=11 // pred_check
        %p224 = pneg %p78
      $region14: #{residual_block_pallas.1} parent=11 // pred_check_branch
        %226 = sbr.rel (%p224) target = $region16
      $region15: #{residual_block_pallas.1} parent=11 // pred_region
        _
      $region16: #{residual_block_pallas.1} parent=11 // pred_fallthru
        _
      // Predicated region
      $region17: #{residual_block_pallas.1} parent=11 // pred_check
        %p227 = pneg %p99
      $region18: #{residual_block_pallas.1} parent=11 // pred_check_branch
        %229 = sbr.rel (%p227) target = $region20
      $region19: #{residual_block_pallas.1} parent=11 // pred_region
        _
      $region20: #{residual_block_pallas.1} parent=11 // pred_fallthru
        _
      // Predicated region
      $region21: #{residual_block_pallas.1} parent=11 // pred_check
        %p230 = pneg %p120
      $region22: #{residual_block_pallas.1} parent=11 // pred_check_branch
        %232 = sbr.rel (%p230) target = $region24
      $region23: #{residual_block_pallas.1} parent=11 // pred_region
        _
      $region24: #{residual_block_pallas.1} parent=11 // pred_fallthru
        _
      // Predicated region
      $region25: #{residual_block_pallas.1} parent=11 // pred_check
        %p233 = pneg %p141
      $region26: #{residual_block_pallas.1} parent=11 // pred_check_branch
        %235 = sbr.rel (%p233) target = $region28
      $region27: #{residual_block_pallas.1} parent=11 // pred_region
        _
      $region28: #{residual_block_pallas.1} parent=11 // pred_fallthru
        _
    $region12: #{residual_block_pallas.1} parent=5 // pred_fallthru
      _
    %p236 = scmp.lt.s32.totalorder %s13, 10
    // Predicated region
    $region29: #{residual_block_pallas.1} parent=5 // pred_check
      %p237 = pneg %p236
    $region30: #{residual_block_pallas.1} parent=5 // pred_check_branch
      %239 = sbr.rel (%p237) target = $region32
    $region31: #{residual_block_pallas.1} parent=5 // pred_region
      // Predicated region
      $region33: #{residual_block_pallas.1} parent=31 // pred_check
        %p240 = pneg %p51
      $region34: #{residual_block_pallas.1} parent=31 // pred_check_branch
        %242 = sbr.rel (%p240) target = $region36
      $region35: #{residual_block_pallas.1} parent=31 // pred_region
        %p243 = scmp.lt.s32.totalorder %s21, 3
        %s244 = scalar_select %p243, %s21, 3
        %s245 = smul.u32 2, %s244
        %p246 = scmp.lt.s32.totalorder %s20, 1
        %s247 = scalar_select %p246, %s20, 1
        %p248 = scmp.lt.s32.totalorder %s245, 7
        %s249 = scalar_select %p248, %s245, 7
        %s250 = smul.addr %s247, 8
        %s251 = sadd.s32 %s249, %s250
        %s252 = smul.addr %s251, 8
        %s253 = scalar_lea.vmem %s0, %s252
        %p254 = scmp.lt.s32.totalorder %s21, 3
        %s255 = scalar_select %p254, %s21, 3
        %s256 = smul.u32 2, %s255
      $region36: #{residual_block_pallas.1} parent=31 // pred_fallthru
        _
    $region32: #{residual_block_pallas.1} parent=5 // pred_fallthru
      _
    %p257 = scmp.le.s32.totalorder 1, %s13
    %p258 = scmp.lt.s32.totalorder %s13, 11
    %p259 = pnand %p257, %p258
    %p260 = pneg %p259
    // Predicated region
    $region37: #{residual_block_pallas.1} parent=5 // pred_check
      _
    $region38: #{residual_block_pallas.1} parent=5 // pred_check_branch
      %262 = sbr.rel (%p259) target = $region40
    $region39: #{residual_block_pallas.1} parent=5 // pred_region
      %s263 = ssub.s32 %s13, 1
      %p264 = scmp.lt.s32.totalorder %s23, 3
      %s265 = scalar_select %p264, %s23, 3
      %s266 = smul.u32 2, %s265
      %p267 = scmp.lt.s32.totalorder %s22, 1
      %s268 = scalar_select %p267, %s22, 1
      %p269 = scmp.lt.s32.totalorder %s266, 7
      %s270 = scalar_select %p269, %s266, 7
      %s271 = smul.addr %s268, 8
      %s272 = sadd.s32 %s270, %s271
      %s273 = smul.addr %s272, 8
      %s274 = scalar_lea.vmem %s0, %s273
      %p275 = pneg %p57
      %p276 = pneg %p54
      %p277 = pneg %p78
      %p278 = pneg %p75
      %p279 = pneg %p99
      %p280 = pneg %p96
      %p281 = pneg %p120
      %p282 = pneg %p117
      %p283 = pneg %p141
      %p284 = pneg %p138
      %p285 = pneg %p175
      %p286 = pneg %p172
      %s287 = ssub.s32 %s23, 1
      %p288 = scmp.gt.s32.totalorder %s287, 0
      %s289 = scalar_select %p288, %s287, 0
      %s290 = smul.u32 2, %s289
      %p291 = scmp.lt.s32.totalorder %s22, 1
      %s292 = scalar_select %p291, %s22, 1
      %p293 = scmp.lt.s32.totalorder %s290, 7
      %s294 = scalar_select %p293, %s290, 7
      %s295 = smul.addr %s292, 8
      %s296 = sadd.s32 %s294, %s295
      %s297 = smul.addr %s296, 8
      %s298 = scalar_lea.vmem %s5, %s297
      %p299 = pneg %p209
      %p300 = pneg %p206
      %s301 = ssub.s32 %s23, 1
      %p302 = scmp.gt.s32.totalorder %s301, 0
      %s303 = scalar_select %p302, %s301, 0
      %s304 = smul.u32 2, %s303
      %p305 = scmp.lt.s32.totalorder %s22, 1
      %s306 = scalar_select %p305, %s22, 1
      %p307 = scmp.lt.s32.totalorder %s304, 7
      %s308 = scalar_select %p307, %s304, 7
      %s309 = smul.addr %s306, 8
      %s310 = sadd.s32 %s308, %s309
      %s311 = smul.addr %s310, 8
      %s312 = scalar_lea.vmem %s6, %s311
      %p313 = scmp.lt.s32.totalorder %s23, 3
      %s314 = scalar_select %p313, %s23, 3
      %s315 = smul.u32 2, %s314
      %p316 = scmp.lt.s32.totalorder %s22, 1
      %s317 = scalar_select %p316, %s22, 1
      %p318 = scmp.lt.s32.totalorder %s315, 7
      %s319 = scalar_select %p318, %s315, 7
      %s320 = smul.addr %s317, 8
      %s321 = sadd.s32 %s319, %s320
      %s322 = smul.addr %s321, 8
      %s323 = scalar_lea.vmem %s0, %s322
      %p324 = scmp.lt.s32.totalorder %s23, 3
      %s325 = scalar_select %p324, %s23, 3
      %s326 = smul.u32 2, %s325
      %s327 = ssub.s32 %s23, 1
      %p328 = scmp.gt.s32.totalorder %s327, 0
      %s329 = scalar_select %p328, %s327, 0
      %s330 = smul.u32 2, %s329
      %p331 = scmp.lt.s32.totalorder %s22, 1
      %s332 = scalar_select %p331, %s22, 1
      %p333 = scmp.lt.s32.totalorder %s330, 7
      %s334 = scalar_select %p333, %s330, 7
      %s335 = smul.addr %s332, 8
      %s336 = sadd.s32 %s334, %s335
      %s337 = smul.addr %s336, 8
      %s338 = scalar_lea.vmem %s5, %s337
      %s339 = ssub.s32 %s23, 1
      %p340 = scmp.gt.s32.totalorder %s339, 0
      %s341 = scalar_select %p340, %s339, 0
      %s342 = smul.u32 2, %s341
      %s343 = ssub.s32 %s23, 1
      %p344 = scmp.gt.s32.totalorder %s343, 0
      %s345 = scalar_select %p344, %s343, 0
      %s346 = smul.u32 2, %s345
      %p347 = scmp.lt.s32.totalorder %s22, 1
      %s348 = scalar_select %p347, %s22, 1
      %p349 = scmp.lt.s32.totalorder %s346, 7
      %s350 = scalar_select %p349, %s346, 7
      %s351 = smul.addr %s348, 8
      %s352 = sadd.s32 %s350, %s351
      %s353 = smul.addr %s352, 8
      %s354 = scalar_lea.vmem %s6, %s353
      %s355 = ssub.s32 %s23, 1
      %p356 = scmp.gt.s32.totalorder %s355, 0
      %s357 = scalar_select %p356, %s355, 0
      %s358 = smul.u32 2, %s357
      %v359 = vld [vmem:[%s323] sm:$0xff]
      %v360 = vld [vmem:[%s323 + $0x8] sm:$0xff]
      %p361 = scmp.gt.s32.totalorder %s23, 0
      // Predicated region
      $region41: #{residual_block_pallas.1} parent=39 // pred_check
        %p362 = pneg %p361
      $region42: #{residual_block_pallas.1} parent=39 // pred_check_branch
        %364 = sbr.rel (%p362) target = $region44
      $region43: #{residual_block_pallas.1} parent=39 // pred_region
        %v365 = vld [vmem:[#allocation2] sm:$0xff]
        %v366 = vld [vmem:[#allocation2 + $0x8] sm:$0xff]
        %v367 = vld [vmem:[#allocation2 + $0x10] sm:$0x3]
        %p368 = scmp.lt.s32.totalorder %s23, 4
        %s369 = scalar_select %p368, 1, 0
        %v370 = vstv %s369
        %vm371 = vcmp.eq.s32.totalorder %v370, 1
        %v372 = vsel %vm371, %v359, 0.0
        %v374 = vrot.slane %v372, 6
        %vm376 = vcmask 1041408
        %v377 = vsel %vm376, %v367, %v374
        %vm381 = vcmask 1045504
        %v382 = vrot.slane %v365, 2
        %v383 = vrot.slane %v366, 2
        %v384 = vsel %vm381, %v382, %v383
        %v385 = vrot.slane %v377, 2
        %v386 = vsel %vm381, %v383, %v385
        %387 = vrot.lane.b32.xlu0 %v384, 8
        %v388 = vpop.permute.xlu0 %387
        %389 = vrot.lane.b32.xlu0 %v386, 8
        %v390 = vpop.permute.xlu0 %389
        %vm393 = vcmask 1043456
        %v394 = vrot.slane %v365, 4
        %v395 = vrot.slane %v366, 4
        %v396 = vsel %vm393, %v394, %v395
        %v397 = vrot.slane %v377, 4
        %v398 = vsel %vm393, %v395, %v397
        %399 = vrot.lane.b32.xlu0 %v396, 16
        %v400 = vpop.permute.xlu0 %399
        %401 = vrot.lane.b32.xlu0 %v398, 16
        %v402 = vpop.permute.xlu0 %401
        %vm405 = vcmask 64512
        %v406 = vsel %vm405, %v365, %v388
        %v407 = vsel %vm405, %v366, %v390
        %vm408 = vcmask 130048
        %v409 = vsel %vm408, %v406, %v400
        %v410 = vsel %vm408, %v407, %v402
        %v411 = vld [vmem:[%s1] sm:$0xff]
        %v412 = vld [vmem:[%s1 + $0x8] sm:$0xff]
        %v413 = vld [vmem:[%s1 + $0x10] sm:$0xff]
        %v414 = vld [vmem:[%s2] sm:$0x1]
        %v416 = vlaneseq
        %v417 = vshrl.u32 %v416, 7
        %v418 = vsub.s32 0, %v417
        %v419 = vrot.slane %v414, %v418
        %vm421 = vcmask 195584
        %v423 = vsel %vm421, %v409, 0
        %v426 = vsel %vm421, %v410, 0
        %428 = vmatprep.subr.mxu0 0.0
        %429 = vmatpush1.msra.mxu0 0.0
        %430 = vmatprep.subr.mxu0 0.0
        %431 = vmatpush1.msra.mxu0 0.0
        %432 = vmatprep.subr.mxu0 0.0
        %433 = vmatpush1.msra.mxu0 0.0
        %434 = vmatprep.subr.mxu0 0.0
        %435 = vmatpush1.msra.mxu0 0.0
        %436 = vmatprep.subr.mxu0 0.0
        %437 = vmatpush1.msra.mxu0 0.0
        %438 = vmatprep.subr.mxu0 0.0
        %439 = vmatpush1.msra.mxu0 0.0
        %440 = vmatprep.subr.mxu0 0.0
        %441 = vmatpush1.msra.mxu0 0.0
        %442 = vmatprep.subr.mxu0 0.0
        %443 = vmatpush1.msra.mxu0 0.0
        %444 = vmatprep.subr.mxu0 0.0
        %445 = vmatpush1.msra.mxu0 0.0
        %446 = vmatprep.subr.mxu0 0.0
        %447 = vmatpush1.msra.mxu0 0.0
        %448 = vmatprep.subr.mxu0 0.0
        %449 = vmatpush1.msra.mxu0 0.0
        %450 = vmatprep.subr.mxu0 0.0
        %451 = vmatpush1.msra.mxu0 0.0
        %452 = vmatprep.subr.mxu0 0.0
        %453 = vmatpush1.msra.mxu0 0.0
        %454 = vmatprep.subr.mxu0 0.0
        %455 = vmatpush1.msra.mxu0 %v413
        %456 = vmatprep.subr.mxu0 0.0
        %457 = vmatpush1.msra.mxu0 %v412
        %458 = vmatprep.subr.mxu0 0.0
        %459 = vmatpush1.msra.mxu0 %v411
        %460 = vmatprep.subr.mxu0 0.0
        %461 = vmatpush2.msra.mxu0 0.0
        %462 = vmatprep.subr.mxu0 0.0
        %463 = vmatpush2.msra.mxu0 0.0
        %464 = vmatprep.subr.mxu0 0.0
        %465 = vmatpush2.msra.mxu0 0.0
        %466 = vmatprep.subr.mxu0 0.0
        %467 = vmatpush2.msra.mxu0 0.0
        %468 = vmatprep.subr.mxu0 0.0
        %469 = vmatpush2.msra.mxu0 0.0
        %470 = vmatprep.subr.mxu0 0.0
        %471 = vmatpush2.msra.mxu0 0.0
        %472 = vmatprep.subr.mxu0 0.0
        %473 = vmatpush2.msra.mxu0 0.0
        %474 = vmatprep.subr.mxu0 0.0
        %475 = vmatpush2.msra.mxu0 0.0
        %476 = vmatprep.subr.mxu0 0.0
        %477 = vmatpush2.msra.mxu0 0.0
        %478 = vmatprep.subr.mxu0 0.0
        %479 = vmatpush2.msra.mxu0 0.0
        %480 = vmatprep.subr.mxu0 0.0
        %481 = vmatpush2.msra.mxu0 0.0
        %482 = vmatprep.subr.mxu0 0.0
        %483 = vmatpush2.msra.mxu0 0.0
        %484 = vmatprep.subr.mxu0 0.0
        %485 = vmatpush2.msra.mxu0 0.0
        %486 = vmatprep.subr.mxu0 0.0
        %487 = vmatpush2.msra.mxu0 0.0
        %488 = vmatprep.subr.mxu0 0.0
        %489 = vmatpush2.msra.mxu0 0.0
        %490 = vmatprep.subr.mxu0 0.0
        %491 = vmatpush2.msra.mxu0 0.0
        %492 = vmatprep.mubr.f32.mxu0 0.0
        %493 = vmatmul.mubr.f32.gmra.mxu0 %v423
        %v494 = vpop.f32.mrf.mxu0
        %v495 = vadd.f32 %v419, %v494
        %v496 = vpop.f32.mrf.mxu0
        %497 = vmatprep.mubr.f32.mxu0 0.0
        %498 = vmatmul.mubr.f32.gmra.mxu0 %v426
        %v499 = vpop.f32.mrf.mxu0
        %v500 = vadd.f32 %v419, %v499
        %v501 = vpop.f32.mrf.mxu0
        %502 = vdwg.mxu0
        %v503 = vtanh.pop %v495
        %v504 = vtanh.pop %v500
        %v505 = vxor.u32 %v495, 2147483648
        %v506 = vxor.u32 %v500, 2147483648
        %v507 = vmul.f32 %v505, 1.442695
        %v508 = vpow.pop %v507
        %v509 = vmul.f32 %v506, 1.442695
        %v510 = vpow.pop %v509
        %v511 = vadd.f32 %v508, 1.0
        %v512 = vadd.f32 %v510, 1.0
        %v513 = vrcp.pop %v511
        %v514 = vmul.f32 1.0, %v513
        %v515 = vrcp.pop %v512
        %v516 = vmul.f32 1.0, %v515
        %519 = vrot.lane.b32.xlu0 %v514, 120
        %v520 = vpop.permute.xlu0 %519
        %521 = vrot.lane.b32.xlu0 %v516, 120
        %v522 = vpop.permute.xlu0 %521
        %v525 = vmul.f32 %v503, %v520
        %v526 = vmul.f32 %v504, %v522
        %v527 = vld [vmem:[%s3] sm:$0xff]
        %v528 = vld [vmem:[%s4] sm:$0x1]
        %v530 = vlaneseq
        %v531 = vshrl.u32 %v530, 7
        %v532 = vsub.s32 0, %v531
        %v533 = vrot.slane %v528, %v532
        %v536 = vsel %vm405, %v525, 0
        %v539 = vsel %vm405, %v526, 0
        %541 = vmatprep.subr.mxu0 0.0
        %542 = vmatpush1.msra.mxu0 0.0
        %543 = vmatprep.subr.mxu0 0.0
        %544 = vmatpush1.msra.mxu0 0.0
        %545 = vmatprep.subr.mxu0 0.0
        %546 = vmatpush1.msra.mxu0 0.0
        %547 = vmatprep.subr.mxu0 0.0
        %548 = vmatpush1.msra.mxu0 0.0
        %549 = vmatprep.subr.mxu0 0.0
        %550 = vmatpush1.msra.mxu0 0.0
        %551 = vmatprep.subr.mxu0 0.0
        %552 = vmatpush1.msra.mxu0 0.0
        %553 = vmatprep.subr.mxu0 0.0
        %554 = vmatpush1.msra.mxu0 0.0
        %555 = vmatprep.subr.mxu0 0.0
        %556 = vmatpush1.msra.mxu0 0.0
        %557 = vmatprep.subr.mxu0 0.0
        %558 = vmatpush1.msra.mxu0 0.0
        %559 = vmatprep.subr.mxu0 0.0
        %560 = vmatpush1.msra.mxu0 0.0
        %561 = vmatprep.subr.mxu0 0.0
        %562 = vmatpush1.msra.mxu0 0.0
        %563 = vmatprep.subr.mxu0 0.0
        %564 = vmatpush1.msra.mxu0 0.0
        %565 = vmatprep.subr.mxu0 0.0
        %566 = vmatpush1.msra.mxu0 0.0
        %567 = vmatprep.subr.mxu0 0.0
        %568 = vmatpush1.msra.mxu0 0.0
        %569 = vmatprep.subr.mxu0 0.0
        %570 = vmatpush1.msra.mxu0 0.0
        %571 = vmatprep.subr.mxu0 0.0
        %572 = vmatpush1.msra.mxu0 %v527
        %573 = vmatprep.subr.mxu0 0.0
        %574 = vmatpush2.msra.mxu0 0.0
        %575 = vmatprep.subr.mxu0 0.0
        %576 = vmatpush2.msra.mxu0 0.0
        %577 = vmatprep.subr.mxu0 0.0
        %578 = vmatpush2.msra.mxu0 0.0
        %579 = vmatprep.subr.mxu0 0.0
        %580 = vmatpush2.msra.mxu0 0.0
        %581 = vmatprep.subr.mxu0 0.0
        %582 = vmatpush2.msra.mxu0 0.0
        %583 = vmatprep.subr.mxu0 0.0
        %584 = vmatpush2.msra.mxu0 0.0
        %585 = vmatprep.subr.mxu0 0.0
        %586 = vmatpush2.msra.mxu0 0.0
        %587 = vmatprep.subr.mxu0 0.0
        %588 = vmatpush2.msra.mxu0 0.0
        %589 = vmatprep.subr.mxu0 0.0
        %590 = vmatpush2.msra.mxu0 0.0
        %591 = vmatprep.subr.mxu0 0.0
        %592 = vmatpush2.msra.mxu0 0.0
        %593 = vmatprep.subr.mxu0 0.0
        %594 = vmatpush2.msra.mxu0 0.0
        %595 = vmatprep.subr.mxu0 0.0
        %596 = vmatpush2.msra.mxu0 0.0
        %597 = vmatprep.subr.mxu0 0.0
        %598 = vmatpush2.msra.mxu0 0.0
        %599 = vmatprep.subr.mxu0 0.0
        %600 = vmatpush2.msra.mxu0 0.0
        %601 = vmatprep.subr.mxu0 0.0
        %602 = vmatpush2.msra.mxu0 0.0
        %603 = vmatprep.subr.mxu0 0.0
        %604 = vmatpush2.msra.mxu0 0.0
        %605 = vmatprep.mubr.f32.mxu0 0.0
        %606 = vmatmul.mubr.f32.gmra.mxu0 %v536
        %v607 = vpop.f32.mrf.mxu0
        %v608 = vadd.f32 %v533, %v607
        %v609 = vpop.f32.mrf.mxu0
        %610 = vmatprep.mubr.f32.mxu0 0.0
        %611 = vmatmul.mubr.f32.gmra.mxu0 %v539
        %v612 = vpop.f32.mrf.mxu0
        %v613 = vadd.f32 %v533, %v612
        %v614 = vpop.f32.mrf.mxu0
        %615 = vdwg.mxu0
        %v618 = vrot.slane %v608, 6
        %v619 = vrot.slane %v613, 6
        %v620 = vsel %vm376, %v618, %v619
        %v624 = vadd.f32 %v365, %v618
        %v625 = vadd.f32 %v366, %v620
        %v626 = vadd.f32 %v377, %v619
        %v627 = vmul.f32 %v624, 0.70710677
        %v628 = vmul.f32 %v625, 0.70710677
        %v629 = vmul.f32 %v626, 0.70710677
        %vm630 = vcmask 64514
        %631 = vst.msk [vmem:[%s338 - $0x2] sm:$0xfc] %vm630, %v627
        %632 = vst.msk [vmem:[%s338 + $0x6] sm:$0xff] %vm405, %v628
        %vm633 = vcmask 58368
        %634 = vst.msk [vmem:[%s338 + $0xe] sm:$0x3] %vm633, %v629
        %635 = vrot.lane.b32.xlu0 %v608, 120
        %v636 = vpop.permute.xlu0 %635
        %637 = vrot.lane.b32.xlu0 %v613, 120
        %v638 = vpop.permute.xlu0 %637
        %641 = vst.msk [vmem:[%s354] sm:$0xff] %vm408, %v636
        %642 = vst.msk [vmem:[%s354 + $0x8] sm:$0xff] %vm408, %v638
      $region44: #{residual_block_pallas.1} parent=39 // pred_fallthru
        _
      %p643 = scmp.lt.s32.totalorder %s23, 4
      // Predicated region
      $region45: #{residual_block_pallas.1} parent=39 // pred_check
        %p644 = pneg %p643
      $region46: #{residual_block_pallas.1} parent=39 // pred_check_branch
        %646 = sbr.rel (%p644) target = $region48
      $region47: #{residual_block_pallas.1} parent=39 // pred_region
        %v647 = vld [vmem:[#allocation2 + $0x10] sm:$0x3]
        %s648 = scalar_select %p361, 1, 0
        %v649 = vstv %s648
        %vm650 = vcmp.eq.s32.totalorder %v649, 1
        %v651 = vsel %vm650, %v647, 0.0
        %vm652 = vcmask 58368
        %653 = vst.msk [vmem:[#allocation2] sm:$0x3] %vm652, %v651
        %vm654 = vcmask 64512
        %655 = vst.msk [vmem:[#allocation2 + $0x2] sm:$0xff] %vm654, %v359
        %656 = vst.msk [vmem:[#allocation2 + $0xa] sm:$0xff] %vm654, %v360
      $region48: #{residual_block_pallas.1} parent=39 // pred_fallthru
        _
      %s657 = ssub.s32 %s23, 1
      %p658 = scmp.gt.s32.totalorder %s657, 0
      %s659 = scalar_select %p658, %s657, 0
      %s660 = smul.u32 2, %s659
      %p661 = scmp.lt.s32.totalorder %s22, 1
      %s662 = scalar_select %p661, %s22, 1
      %p663 = scmp.lt.s32.totalorder %s660, 7
      %s664 = scalar_select %p663, %s660, 7
      %s665 = smul.addr %s662, 8
      %s666 = sadd.s32 %s664, %s665
      %s667 = smul.addr %s666, 8
      %s668 = scalar_lea.vmem %s5, %s667
      %s669 = ssub.s32 %s23, 1
      %p670 = scmp.gt.s32.totalorder %s669, 0
      %s671 = scalar_select %p670, %s669, 0
      %s672 = smul.u32 2, %s671
      %p673 = scmp.lt.s32.totalorder %s22, 1
      %s674 = scalar_select %p673, %s22, 1
      %p675 = scmp.lt.s32.totalorder %s672, 7
      %s676 = scalar_select %p675, %s672, 7
      %s677 = smul.addr %s674, 8
      %s678 = sadd.s32 %s676, %s677
      %s679 = smul.addr %s678, 8
      %s680 = scalar_lea.vmem %s6, %s679
      // Predicated region
      $region49: #{residual_block_pallas.1} parent=39 // pred_check
        %p681 = pneg %p172
      $region50: #{residual_block_pallas.1} parent=39 // pred_check_branch
        %683 = sbr.rel (%p681) target = $region52
      $region51: #{residual_block_pallas.1} parent=39 // pred_region
        %s684 = ssub.s32 %s23, 1
        %p685 = scmp.gt.s32.totalorder %s684, 0
        %s686 = scalar_select %p685, %s684, 0
        %s687 = smul.u32 2, %s686
      $region52: #{residual_block_pallas.1} parent=39 // pred_fallthru
        _
      // Predicated region
      $region53: #{residual_block_pallas.1} parent=39 // pred_check
        %p688 = pneg %p206
      $region54: #{residual_block_pallas.1} parent=39 // pred_check_branch
        %690 = sbr.rel (%p688) target = $region56
      $region55: #{residual_block_pallas.1} parent=39 // pred_region
        %s691 = ssub.s32 %s23, 1
        %p692 = scmp.gt.s32.totalorder %s691, 0
        %s693 = scalar_select %p692, %s691, 0
        %s694 = smul.u32 2, %s693
      $region56: #{residual_block_pallas.1} parent=39 // pred_fallthru
        _
    $region40: #{residual_block_pallas.1} parent=5 // pred_fallthru
      _
    %p695 = scmp.le.s32.totalorder 2, %s13
    // Predicated region
    $region57: #{residual_block_pallas.1} parent=5 // pred_check
      %p696 = pneg %p695
    $region58: #{residual_block_pallas.1} parent=5 // pred_check_branch
      %698 = sbr.rel (%p696) target = $region60
    $region59: #{residual_block_pallas.1} parent=5 // pred_region
      %s699 = ssub.s32 %s13, 2
      // Predicated region
      $region61: #{residual_block_pallas.1} parent=59 // pred_check
        %p700 = pneg %p178
      $region62: #{residual_block_pallas.1} parent=59 // pred_check_branch
        %702 = sbr.rel (%p700) target = $region64
      $region63: #{residual_block_pallas.1} parent=59 // pred_region
        %s703 = ssub.s32 %s25, 1
        %p704 = scmp.gt.s32.totalorder %s703, 0
        %s705 = scalar_select %p704, %s703, 0
        %s706 = smul.u32 2, %s705
        %p707 = scmp.lt.s32.totalorder %s24, 1
        %s708 = scalar_select %p707, %s24, 1
        %p709 = scmp.lt.s32.totalorder %s706, 7
        %s710 = scalar_select %p709, %s706, 7
        %s711 = smul.addr %s708, 8
        %s712 = sadd.s32 %s710, %s711
        %s713 = smul.addr %s712, 8
        %s714 = scalar_lea.vmem %s5, %s713
      $region64: #{residual_block_pallas.1} parent=59 // pred_fallthru
        _
      // Predicated region
      $region65: #{residual_block_pallas.1} parent=59 // pred_check
        %p715 = pneg %p212
      $region66: #{residual_block_pallas.1} parent=59 // pred_check_branch
        %717 = sbr.rel (%p715) target = $region68
      $region67: #{residual_block_pallas.1} parent=59 // pred_region
        %s718 = ssub.s32 %s25, 1
        %p719 = scmp.gt.s32.totalorder %s718, 0
        %s720 = scalar_select %p719, %s718, 0
        %s721 = smul.u32 2, %s720
        %p722 = scmp.lt.s32.totalorder %s24, 1
        %s723 = scalar_select %p722, %s24, 1
        %p724 = scmp.lt.s32.totalorder %s721, 7
        %s725 = scalar_select %p724, %s721, 7
        %s726 = smul.addr %s723, 8
        %s727 = sadd.s32 %s725, %s726
        %s728 = smul.addr %s727, 8
        %s729 = scalar_lea.vmem %s6, %s728
      $region68: #{residual_block_pallas.1} parent=59 // pred_fallthru
        _
    $region60: #{residual_block_pallas.1} parent=5 // pred_fallthru
      _
  $region6: #{residual_block_pallas.1} parent=0 // loop_footer
    %s17 = sadd.s32 1, %s13
  $region7: #{residual_block_pallas.1} parent=0 // loop_footer_branch
    %12 = sbr.rel target = $region3
  $region8: #{residual_block_pallas.1} parent=0 // loop_exit
    _

</llo_original>
